<compile_context>
chip_gen: v5e
topology: v5e:2x2
jax: 0.10.0
libtpu: 0.0.40
codegen_flags: <defaults>
</compile_context>

<pallas_src>
import functools

import jax
import jax.numpy as jnp
from jax.experimental import pallas as pl
from jax.experimental.pallas import tpu as pltpu

P_M = 0.75          # self.p_m
N_M = 1.0 - P_M     # self.n_m
NUM_INSTANCE = 4    # cfg.DATALOADER.NUM_INSTANCE (k)


def _density_loss_kernel(feats_ref, lab_col_ref, lab_row_ref,
                         out_pos_ref, out_neg_ref, *, n_rows, k, tm):
    i = pl.program_id(0)
    start = pl.multiple_of(i * tm, tm)            # aligned row offset of this tile

    lhs = feats_ref[pl.ds(start, tm), :]          # (TM, Dp) bf16, rows of the tile
    rhs = feats_ref[...]                          # (N,  Dp) bf16, resident

    # aff tile = lhs @ rhs.T  (bf16 operands, f32 MXU accumulation; the
    # ((1,),(1,)) contraction is the flash-attention q.k^T pattern Mosaic
    # consumes natively, no per-step transpose of the resident matrix).
    aff = jax.lax.dot_general(
        lhs, rhs, dimension_numbers=(((1,), (1,)), ((), ())),
        preferred_element_type=jnp.float32)       # (TM, N) f32

    same = lab_col_ref[...] == lab_row_ref[...]   # (TM, N) bool
    col_ids = jax.lax.broadcasted_iota(jnp.int32, (tm, n_rows), 1)
    row_ids = jax.lax.broadcasted_iota(jnp.int32, (tm, n_rows), 0) + start
    is_pos = jnp.logical_and(same, col_ids != row_ids)   # same id, off-diagonal

    inv_np = jnp.float32(1.0 / (k - 1))        # positives per row (PK sampling)
    inv_nn = jnp.float32(1.0 / (n_rows - k))   # negatives per row

    # Per-row masked means (exact diagonal exclusion via is_pos).
    sum_pos = jnp.sum(jnp.where(is_pos, aff, 0.0), axis=-1, keepdims=True)
    sum_neg = jnp.sum(jnp.where(same, 0.0, aff), axis=-1, keepdims=True)
    mean_pos = jnp.maximum(sum_pos * inv_np, N_M)          # clamp-from-below
    mean_neg = jnp.minimum(sum_neg * inv_nn, P_M)          # clamp-from-above

    # Fused branch: ONE exp per element (branch picked by `same` beforehand).
    # exp(w).detach() only affects grads; the forward value is identical.
    optim = jnp.where(same, jnp.maximum(P_M - aff, 0.0),
                            jnp.maximum(aff - N_M, 0.0))
    w_arg = jnp.where(same, mean_pos - aff, aff - mean_neg)
    val = jnp.exp(jnp.maximum(w_arg, 0.0)) * optim
    val = val * val

    pos_val = jnp.where(is_pos, val, 0.0)
    neg_val = jnp.where(same, 0.0, val)

    # Sublane fold (TM, N) -> (8, N): pure elementwise vreg adds (no XLU tree
    # reduce per step).  The single cross-lane reduction + sqrt lives in the
    # wrapper, so the grid stays fully parallel (v7x: both TCs can take tiles).
    def fold8(x):
        return jnp.sum(x.reshape(tm // 8, 8, n_rows), axis=0)

    out_pos_ref[...] = fold8(pos_val)
    out_neg_ref[...] = fold8(neg_val)


def _vmem_limit_bytes():
    """~85% of the physical per-core VMEM (v5e/v6e: ~108 MiB, v7x: ~54 MiB)."""
    cap = 64 * 1024 * 1024
    try:
        info = pltpu.get_tpu_info()
        cap = int(getattr(info, "vmem_capacity_bytes", cap)) or cap
    except Exception:
        pass
    return max(32 * 1024 * 1024, int(cap * 0.85))


def density_loss(feats, labels, *, k=NUM_INSTANCE, tm=None):
    """feats: (N, D) float, labels: (N,) int with exactly k instances per id."""
    n, d = feats.shape
    assert n % 8 == 0, "N must be a multiple of 8 (PK sampling batch)"
    assert 2 <= k < n
    # TODO(synk): general (non multiple-of-8) N would need a validity mask.

    # --- wrapper-side prep: pad D to a lane-dense multiple of 128 (exact for
    # norms/dots), L2-normalize in f32 with rsqrt (torch F.normalize semantics:
    # x / max(||x||, 1e-12)) and cast once to bf16 for the MXU. ---
    d_pad = ((d + 127) // 128) * 128
    f32 = feats.astype(jnp.float32)
    if d_pad != d:
        f32 = jnp.pad(f32, ((0, 0), (0, d_pad - d)))
    sumsq = jnp.sum(f32 * f32, axis=-1, keepdims=True)
    feats_n = (f32 * jax.lax.rsqrt(jnp.maximum(sumsq, 1e-24))).astype(jnp.bfloat16)

    vmem_limit = _vmem_limit_bytes()

    # Row tile: biggest (8,128)-friendly divisor of N whose working set fits
    # the per-chip VMEM budget (resident bf16 feats assumed double-buffered in
    # the worst case + ~6 f32 (TM,N) temporaries per step + output blocks).
    if tm is None:
        fixed = 2 * n * d_pad * 2 + 2 * 2 * 8 * n * 4 + 4 * n * 4 + (2 << 20)
        tm = 8
        for cand in (512, 256, 128, 64, 32, 16, 8):
            if n % cand == 0 and fixed + 6 * cand * n * 4 <= vmem_limit:
                tm = cand
                break
    assert n % tm == 0 and tm % 8 == 0
    num_tiles = n // tm
    grid = (num_tiles,)

    lab_col = labels.reshape(n, 1).astype(jnp.int32)
    lab_row = labels.reshape(1, n).astype(jnp.int32)

    kernel = functools.partial(_density_loss_kernel, n_rows=n, k=k, tm=tm)

    cost = pl.CostEstimate(
        flops=2 * n * n * d_pad,
        transcendentals=n * n,                       # one fused exp per element
        bytes_accessed=n * d_pad * 2 + 2 * n * 4 + 2 * num_tiles * 8 * n * 4,
    )

    out_shape = (jax.ShapeDtypeStruct((num_tiles * 8, n), jnp.float32),   # pos^2 partials
                 jax.ShapeDtypeStruct((num_tiles * 8, n), jnp.float32))   # neg^2 partials

    def make_call(single_buffer):
        # Constant-index-map operands do not need a second pipeline buffer.
        res = dict(pipeline_mode=pl.Buffered(1)) if single_buffer else {}
        return pl.pallas_call(
            kernel,
            out_shape=out_shape,
            grid_spec=pltpu.PrefetchScalarGridSpec(
                num_scalar_prefetch=0,
                grid=grid,
                in_specs=[
                    pl.BlockSpec((n, d_pad), lambda i: (0, 0), **res),  # normalized feats, resident
                    pl.BlockSpec((tm, 1), lambda i: (i, 0)),            # row-tile labels
                    pl.BlockSpec((1, n), lambda i: (0, 0), **res),      # full labels (cols)
                ],
                out_specs=[
                    pl.BlockSpec((8, n), lambda i: (i, 0)),
                    pl.BlockSpec((8, n), lambda i: (i, 0)),
                ],
            ),
            compiler_params=pltpu.CompilerParams(
                dimension_semantics=("parallel",),    # independent tiles (2 TCs on v7x)
                vmem_limit_bytes=vmem_limit,
            ),
            cost_estimate=cost,
        )

    try:
        out_pos, out_neg = make_call(True)(feats_n, lab_col, lab_row)
    except Exception:
        # Installed JAX may not accept pipeline_mode=pl.Buffered(1); fall back
        # to default (double-buffered) specs -- correctness is unchanged.
        out_pos, out_neg = make_call(False)(feats_n, lab_col, lab_row)

    pos_sq = jnp.sum(out_pos)
    neg_sq = jnp.sum(out_neg)
    return (jnp.sqrt(pos_sq) + jnp.sqrt(neg_sq)) / jnp.float32(n)


def density_loss_ref(feats, labels):
    """Pure-JAX f32 reference mirroring the PyTorch forward (for verification)."""
    feats = feats.astype(jnp.float32)
    n = feats.shape[0]
    feats_n = feats / jnp.maximum(
        jnp.linalg.norm(feats, axis=-1, keepdims=True), 1e-12)
    aff = feats_n @ feats_n.T
    same = labels[:, None] == labels[None, :]
    eye = jnp.eye(n, dtype=bool)
    is_pos = same & ~eye
    is_neg = ~same
    pos_m = is_pos.astype(jnp.float32)
    neg_m = is_neg.astype(jnp.float32)
    n_pos = pos_m.sum(-1, keepdims=True)
    n_neg = neg_m.sum(-1, keepdims=True)
    mean_pos = (aff * pos_m).sum(-1, keepdims=True) / n_pos
    mean_pos = jnp.where(mean_pos < N_M, N_M, mean_pos)
    mean_neg = (aff * neg_m).sum(-1, keepdims=True) / n_neg
    mean_neg = jnp.where(mean_neg > P_M, P_M, mean_neg)
    optim_pos = jnp.maximum(P_M - aff, 0.0)
    optim_neg = jnp.maximum(aff - N_M, 0.0)
    p_w = jnp.maximum(mean_pos - aff, 0.0)
    n_w = jnp.maximum(aff - mean_neg, 0.0)
    pos_sq = jnp.sum(pos_m * (jnp.exp(p_w) * optim_pos) ** 2)
    neg_sq = jnp.sum(neg_m * (jnp.exp(n_w) * optim_neg) ** 2)
    return (jnp.sqrt(pos_sq) + jnp.sqrt(neg_sq)) / n


if __name__ == "__main__":
    key = jax.random.PRNGKey(0)
    num_ids = 4
    k = NUM_INSTANCE                  # instances per identity (PK sampling)
    N = num_ids * k                   # 16 samples
    D = 32                            # feature dim (padded to 128 inside)

    kf, _ = jax.random.split(key)
    feats = jax.random.normal(kf, (N, D), dtype=jnp.float32)
    labels = jnp.repeat(jnp.arange(num_ids, dtype=jnp.int32), k)

    loss = jax.block_until_ready(density_loss(feats, labels, k=k))

    ref = density_loss_ref(feats, labels)
    # bf16 MXU operands => loosened tolerance vs. the f32 reference.
    assert jnp.allclose(loss, ref, atol=2e-2, rtol=2e-2), (loss, ref)

    print("KERNEL_OK")
</pallas_src>

<mosaic_0001>
module attributes {stable_mosaic.version = 11 : i64} {
  func.func @_density_loss_kernel(%arg0: i32, %arg1: memref<16x128xbf16, #tpu.memory_space<vmem>>, %arg2: memref<16x1xi32, #tpu.memory_space<vmem>>, %arg3: memref<1x16xi32, #tpu.memory_space<vmem>>, %arg4: memref<8x16xf32, #tpu.memory_space<vmem>>, %arg5: memref<8x16xf32, #tpu.memory_space<vmem>>) attributes {dimension_semantics = [#tpu.dimension_semantics<parallel>], iteration_bounds = array<i64: 1>, scalar_prefetch = 0 : i64, scratch_operands = 0 : i64, tpu.core_type = #tpu.core_type<tc>, window_params = [{pipeline_mode = #tpu.pipeline_mode<synchronous>, transform_indices = @transform_0, window_bounds = array<i64: 16, 128>}, {transform_indices = @transform_1, window_bounds = array<i64: 16, 1>}, {pipeline_mode = #tpu.pipeline_mode<synchronous>, transform_indices = @transform_2, window_bounds = array<i64: 1, 16>}, {transform_indices = @transform_3, window_bounds = array<i64: 8, 16>}, {transform_indices = @transform_4, window_bounds = array<i64: 8, 16>}]} {
    %c16_i32 = arith.constant 16 : i32
    %0 = arith.muli %arg0, %c16_i32 : i32
    %1 = tpu.assume_multiple %0, 16 : i32
    %2 = arith.index_cast %1 : i32 to index
    %c0 = arith.constant 0 : index
    %3 = vector.load %arg1[%2, %c0] : memref<16x128xbf16, #tpu.memory_space<vmem>>, vector<16x128xbf16>
    %c0_0 = arith.constant 0 : index
    %c0_1 = arith.constant 0 : index
    %4 = vector.load %arg1[%c0_0, %c0_1] : memref<16x128xbf16, #tpu.memory_space<vmem>>, vector<16x128xbf16>
    %cst = arith.constant dense<0.000000e+00> : vector<16x16xf32>
    %5 = tpu.matmul %3, %4, %cst {dimension_numbers = #tpu.dot_dimension_numbers<[1], [1], [0], [0], [0, 0, 1, 0], [], []>} : vector<16x128xbf16>, vector<16x128xbf16>, vector<16x16xf32> -> vector<16x16xf32>
    %c0_2 = arith.constant 0 : index
    %c0_3 = arith.constant 0 : index
    %6 = vector.load %arg2[%c0_2, %c0_3] : memref<16x1xi32, #tpu.memory_space<vmem>>, vector<16x1xi32>
    %c0_4 = arith.constant 0 : index
    %c0_5 = arith.constant 0 : index
    %7 = vector.load %arg3[%c0_4, %c0_5] : memref<1x16xi32, #tpu.memory_space<vmem>>, vector<1x16xi32>
    %8 = vector.broadcast %6 : vector<16x1xi32> to vector<16x16xi32>
    %9 = vector.broadcast %7 : vector<1x16xi32> to vector<16x16xi32>
    %10 = arith.cmpi eq, %8, %9 : vector<16x16xi32>
    %11 = tpu.iota {dimensions = array<i32: 1>} : vector<16x16xi32>
    %12 = tpu.iota {dimensions = array<i32: 0>} : vector<16x16xi32>
    %13 = vector.broadcast %1 : i32 to vector<16x16xi32>
    %14 = arith.addi %12, %13 : vector<16x16xi32>
    %15 = arith.cmpi ne, %11, %14 : vector<16x16xi32>
    %16 = arith.andi %10, %15 : vector<16x16xi1>
    %cst_6 = arith.constant 0.000000e+00 : f32
    %17 = vector.broadcast %cst_6 : f32 to vector<16x16xf32>
    %18 = arith.select %16, %5, %17 : vector<16x16xi1>, vector<16x16xf32>
    %cst_7 = arith.constant dense<0.000000e+00> : vector<16xf32>
    %19 = vector.multi_reduction <add>, %18, %cst_7 [1] : vector<16x16xf32> to vector<16xf32>
    %20 = vector.shape_cast %19 : vector<16xf32> to vector<16x1xf32>
    %cst_8 = arith.constant 0.000000e+00 : f32
    %21 = vector.broadcast %cst_8 : f32 to vector<16x16xf32>
    %22 = arith.select %10, %21, %5 : vector<16x16xi1>, vector<16x16xf32>
    %cst_9 = arith.constant dense<0.000000e+00> : vector<16xf32>
    %23 = vector.multi_reduction <add>, %22, %cst_9 [1] : vector<16x16xf32> to vector<16xf32>
    %24 = vector.shape_cast %23 : vector<16xf32> to vector<16x1xf32>
    %cst_10 = arith.constant 0.333333343 : f32
    %25 = vector.broadcast %cst_10 : f32 to vector<16x1xf32>
    %26 = arith.mulf %20, %25 : vector<16x1xf32>
    %cst_11 = arith.constant 2.500000e-01 : f32
    %27 = vector.broadcast %cst_11 : f32 to vector<16x1xf32>
    %28 = arith.maximumf %26, %27 : vector<16x1xf32>
    %cst_12 = arith.constant 0.0833333358 : f32
    %29 = vector.broadcast %cst_12 : f32 to vector<16x1xf32>
    %30 = arith.mulf %24, %29 : vector<16x1xf32>
    %cst_13 = arith.constant 7.500000e-01 : f32
    %31 = vector.broadcast %cst_13 : f32 to vector<16x1xf32>
    %32 = arith.minimumf %30, %31 : vector<16x1xf32>
    %cst_14 = arith.constant 7.500000e-01 : f32
    %33 = vector.broadcast %cst_14 : f32 to vector<16x16xf32>
    %34 = arith.subf %33, %5 : vector<16x16xf32>
    %cst_15 = arith.constant 0.000000e+00 : f32
    %35 = vector.broadcast %cst_15 : f32 to vector<16x16xf32>
    %36 = arith.maximumf %34, %35 : vector<16x16xf32>
    %cst_16 = arith.constant 2.500000e-01 : f32
    %37 = vector.broadcast %cst_16 : f32 to vector<16x16xf32>
    %38 = arith.subf %5, %37 : vector<16x16xf32>
    %cst_17 = arith.constant 0.000000e+00 : f32
    %39 = vector.broadcast %cst_17 : f32 to vector<16x16xf32>
    %40 = arith.maximumf %38, %39 : vector<16x16xf32>
    %41 = arith.select %10, %36, %40 : vector<16x16xi1>, vector<16x16xf32>
    %42 = vector.broadcast %28 : vector<16x1xf32> to vector<16x16xf32>
    %43 = arith.subf %42, %5 : vector<16x16xf32>
    %44 = vector.broadcast %32 : vector<16x1xf32> to vector<16x16xf32>
    %45 = arith.subf %5, %44 : vector<16x16xf32>
    %46 = arith.select %10, %43, %45 : vector<16x16xi1>, vector<16x16xf32>
    %cst_18 = arith.constant 0.000000e+00 : f32
    %47 = vector.broadcast %cst_18 : f32 to vector<16x16xf32>
    %48 = arith.maximumf %46, %47 : vector<16x16xf32>
    %49 = math.exp %48 : vector<16x16xf32>
    %50 = arith.mulf %49, %41 : vector<16x16xf32>
    %51 = arith.mulf %50, %50 : vector<16x16xf32>
    %cst_19 = arith.constant 0.000000e+00 : f32
    %52 = vector.broadcast %cst_19 : f32 to vector<16x16xf32>
    %53 = arith.select %16, %51, %52 : vector<16x16xi1>, vector<16x16xf32>
    %cst_20 = arith.constant 0.000000e+00 : f32
    %54 = vector.broadcast %cst_20 : f32 to vector<16x16xf32>
    %55 = arith.select %10, %54, %51 : vector<16x16xi1>, vector<16x16xf32>
    %56 = vector.shape_cast %53 : vector<16x16xf32> to vector<2x8x16xf32>
    %cst_21 = arith.constant dense<0.000000e+00> : vector<8x16xf32>
    %57 = vector.multi_reduction <add>, %56, %cst_21 [0] : vector<2x8x16xf32> to vector<8x16xf32>
    %c0_22 = arith.constant 0 : index
    %c0_23 = arith.constant 0 : index
    %58 = vector.load %arg4[%c0_22, %c0_23] : memref<8x16xf32, #tpu.memory_space<vmem>>, vector<8x16xf32>
    tpu.vector_store %arg4[%c0_22, %c0_23], %57 {strides = array<i32>} : memref<8x16xf32, #tpu.memory_space<vmem>>, vector<8x16xf32>,
    %59 = vector.shape_cast %55 : vector<16x16xf32> to vector<2x8x16xf32>
    %cst_24 = arith.constant dense<0.000000e+00> : vector<8x16xf32>
    %60 = vector.multi_reduction <add>, %59, %cst_24 [0] : vector<2x8x16xf32> to vector<8x16xf32>
    %c0_25 = arith.constant 0 : index
    %c0_26 = arith.constant 0 : index
    %61 = vector.load %arg5[%c0_25, %c0_26] : memref<8x16xf32, #tpu.memory_space<vmem>>, vector<8x16xf32>
    tpu.vector_store %arg5[%c0_25, %c0_26], %60 {strides = array<i32>} : memref<8x16xf32, #tpu.memory_space<vmem>>, vector<8x16xf32>,
    return
  }
  func.func @transform_0(%arg0: i32) -> (i32, i32) {
    %c0_i32 = arith.constant 0 : i32
    %c0_i32_0 = arith.constant 0 : i32
    %c0_i32_1 = arith.constant 0 : i32
    return %c0_i32, %c0_i32_0 : i32, i32
  }
  func.func @transform_1(%arg0: i32) -> (i32, i32) {
    %c0_i32 = arith.constant 0 : i32
    %c0_i32_0 = arith.constant 0 : i32
    return %arg0, %c0_i32 : i32, i32
  }
  func.func @transform_2(%arg0: i32) -> (i32, i32) {
    %c0_i32 = arith.constant 0 : i32
    %c0_i32_0 = arith.constant 0 : i32
    %c0_i32_1 = arith.constant 0 : i32
    return %c0_i32, %c0_i32_0 : i32, i32
  }
  func.func @transform_3(%arg0: i32) -> (i32, i32) {
    %c0_i32 = arith.constant 0 : i32
    %c0_i32_0 = arith.constant 0 : i32
    return %arg0, %c0_i32 : i32, i32
  }
  func.func @transform_4(%arg0: i32) -> (i32, i32) {
    %c0_i32 = arith.constant 0 : i32
    %c0_i32_0 = arith.constant 0 : i32
    return %arg0, %c0_i32 : i32, i32
  }
}

module attributes {stable_mosaic.version = 11 : i64} {
  func.func @_density_loss_kernel(%arg0: i32, %arg1: memref<16x128xbf16, #tpu.memory_space<vmem>>, %arg2: memref<16x1xi32, #tpu.memory_space<vmem>>, %arg3: memref<1x16xi32, #tpu.memory_space<vmem>>, %arg4: memref<8x16xf32, #tpu.memory_space<vmem>>, %arg5: memref<8x16xf32, #tpu.memory_space<vmem>>) attributes {dimension_semantics = [#tpu.dimension_semantics<parallel>], iteration_bounds = array<i64: 1>, scalar_prefetch = 0 : i64, scratch_operands = 0 : i64, tpu.core_type = #tpu.core_type<tc>, window_params = [{pipeline_mode = #tpu.pipeline_mode<synchronous>, transform_indices = @transform_0, window_bounds = array<i64: 16, 128>}, {transform_indices = @transform_1, window_bounds = array<i64: 16, 1>}, {pipeline_mode = #tpu.pipeline_mode<synchronous>, transform_indices = @transform_2, window_bounds = array<i64: 1, 16>}, {transform_indices = @transform_3, window_bounds = array<i64: 8, 16>}, {transform_indices = @transform_4, window_bounds = array<i64: 8, 16>}]} {
    %c16_i32 = arith.constant 16 : i32
    %0 = arith.muli %arg0, %c16_i32 : i32
    %1 = tpu.assume_multiple %0, 16 : i32
    %2 = arith.index_cast %1 : i32 to index
    %c0 = arith.constant 0 : index
    %3 = vector.load %arg1[%2, %c0] : memref<16x128xbf16, #tpu.memory_space<vmem>>, vector<16x128xbf16>
    %c0_0 = arith.constant 0 : index
    %c0_1 = arith.constant 0 : index
    %4 = vector.load %arg1[%c0_0, %c0_1] : memref<16x128xbf16, #tpu.memory_space<vmem>>, vector<16x128xbf16>
    %cst = arith.constant dense<0.000000e+00> : vector<16x16xf32>
    %5 = tpu.matmul %3, %4, %cst {dimension_numbers = #tpu.dot_dimension_numbers<[1], [1], [0], [0], [0, 0, 1, 0], [], []>} : vector<16x128xbf16>, vector<16x128xbf16>, vector<16x16xf32> -> vector<16x16xf32>
    %c0_2 = arith.constant 0 : index
    %c0_3 = arith.constant 0 : index
    %6 = vector.load %arg2[%c0_2, %c0_3] : memref<16x1xi32, #tpu.memory_space<vmem>>, vector<16x1xi32>
    %c0_4 = arith.constant 0 : index
    %c0_5 = arith.constant 0 : index
    %7 = vector.load %arg3[%c0_4, %c0_5] : memref<1x16xi32, #tpu.memory_space<vmem>>, vector<1x16xi32>
    %8 = vector.broadcast %6 : vector<16x1xi32> to vector<16x16xi32>
    %9 = vector.broadcast %7 : vector<1x16xi32> to vector<16x16xi32>
    %10 = arith.cmpi eq, %8, %9 : vector<16x16xi32>
    %11 = tpu.iota {dimensions = array<i32: 1>} : vector<16x16xi32>
    %12 = tpu.iota {dimensions = array<i32: 0>} : vector<16x16xi32>
    %13 = vector.broadcast %1 : i32 to vector<16x16xi32>
    %14 = arith.addi %12, %13 : vector<16x16xi32>
    %15 = arith.cmpi ne, %11, %14 : vector<16x16xi32>
    %16 = arith.andi %10, %15 : vector<16x16xi1>
    %cst_6 = arith.constant 0.000000e+00 : f32
    %17 = vector.broadcast %cst_6 : f32 to vector<16x16xf32>
    %18 = arith.select %16, %5, %17 : vector<16x16xi1>, vector<16x16xf32>
    %cst_7 = arith.constant dense<0.000000e+00> : vector<16xf32>
    %19 = vector.multi_reduction <add>, %18, %cst_7 [1] : vector<16x16xf32> to vector<16xf32>
    %20 = vector.shape_cast %19 : vector<16xf32> to vector<16x1xf32>
    %cst_8 = arith.constant 0.000000e+00 : f32
    %21 = vector.broadcast %cst_8 : f32 to vector<16x16xf32>
    %22 = arith.select %10, %21, %5 : vector<16x16xi1>, vector<16x16xf32>
    %cst_9 = arith.constant dense<0.000000e+00> : vector<16xf32>
    %23 = vector.multi_reduction <add>, %22, %cst_9 [1] : vector<16x16xf32> to vector<16xf32>
    %24 = vector.shape_cast %23 : vector<16xf32> to vector<16x1xf32>
    %cst_10 = arith.constant 0.333333343 : f32
    %25 = vector.broadcast %cst_10 : f32 to vector<16x1xf32>
    %26 = arith.mulf %20, %25 : vector<16x1xf32>
    %cst_11 = arith.constant 2.500000e-01 : f32
    %27 = vector.broadcast %cst_11 : f32 to vector<16x1xf32>
    %28 = arith.maximumf %26, %27 : vector<16x1xf32>
    %cst_12 = arith.constant 0.0833333358 : f32
    %29 = vector.broadcast %cst_12 : f32 to vector<16x1xf32>
    %30 = arith.mulf %24, %29 : vector<16x1xf32>
    %cst_13 = arith.constant 7.500000e-01 : f32
    %31 = vector.broadcast %cst_13 : f32 to vector<16x1xf32>
    %32 = arith.minimumf %30, %31 : vector<16x1xf32>
    %cst_14 = arith.constant 7.500000e-01 : f32
    %33 = vector.broadcast %cst_14 : f32 to vector<16x16xf32>
    %34 = arith.subf %33, %5 : vector<16x16xf32>
    %cst_15 = arith.constant 0.000000e+00 : f32
    %35 = vector.broadcast %cst_15 : f32 to vector<16x16xf32>
    %36 = arith.maximumf %34, %35 : vector<16x16xf32>
    %cst_16 = arith.constant 2.500000e-01 : f32
    %37 = vector.broadcast %cst_16 : f32 to vector<16x16xf32>
    %38 = arith.subf %5, %37 : vector<16x16xf32>
    %cst_17 = arith.constant 0.000000e+00 : f32
    %39 = vector.broadcast %cst_17 : f32 to vector<16x16xf32>
    %40 = arith.maximumf %38, %39 : vector<16x16xf32>
    %41 = arith.select %10, %36, %40 : vector<16x16xi1>, vector<16x16xf32>
    %42 = vector.broadcast %28 : vector<16x1xf32> to vector<16x16xf32>
    %43 = arith.subf %42, %5 : vector<16x16xf32>
    %44 = vector.broadcast %32 : vector<16x1xf32> to vector<16x16xf32>
    %45 = arith.subf %5, %44 : vector<16x16xf32>
    %46 = arith.select %10, %43, %45 : vector<16x16xi1>, vector<16x16xf32>
    %cst_18 = arith.constant 0.000000e+00 : f32
    %47 = vector.broadcast %cst_18 : f32 to vector<16x16xf32>
    %48 = arith.maximumf %46, %47 : vector<16x16xf32>
    %49 = math.exp %48 : vector<16x16xf32>
    %50 = arith.mulf %49, %41 : vector<16x16xf32>
    %51 = arith.mulf %50, %50 : vector<16x16xf32>
    %cst_19 = arith.constant 0.000000e+00 : f32
    %52 = vector.broadcast %cst_19 : f32 to vector<16x16xf32>
    %53 = arith.select %16, %51, %52 : vector<16x16xi1>, vector<16x16xf32>
    %cst_20 = arith.constant 0.000000e+00 : f32
    %54 = vector.broadcast %cst_20 : f32 to vector<16x16xf32>
    %55 = arith.select %10, %54, %51 : vector<16x16xi1>, vector<16x16xf32>
    %56 = vector.shape_cast %53 : vector<16x16xf32> to vector<2x8x16xf32>
    %cst_21 = arith.constant dense<0.000000e+00> : vector<8x16xf32>
    %57 = vector.multi_reduction <add>, %56, %cst_21 [0] : vector<2x8x16xf32> to vector<8x16xf32>
    %c0_22 = arith.constant 0 : index
    %c0_23 = arith.constant 0 : index
    %58 = vector.load %arg4[%c0_22, %c0_23] : memref<8x16xf32, #tpu.memory_space<vmem>>, vector<8x16xf32>
    tpu.vector_store %arg4[%c0_22, %c0_23], %57 {strides = array<i32>} : memref<8x16xf32, #tpu.memory_space<vmem>>, vector<8x16xf32>,
    %59 = vector.shape_cast %55 : vector<16x16xf32> to vector<2x8x16xf32>
    %cst_24 = arith.constant dense<0.000000e+00> : vector<8x16xf32>
    %60 = vector.multi_reduction <add>, %59, %cst_24 [0] : vector<2x8x16xf32> to vector<8x16xf32>
    %c0_25 = arith.constant 0 : index
    %c0_26 = arith.constant 0 : index
    %61 = vector.load %arg5[%c0_25, %c0_26] : memref<8x16xf32, #tpu.memory_space<vmem>>, vector<8x16xf32>
    tpu.vector_store %arg5[%c0_25, %c0_26], %60 {strides = array<i32>} : memref<8x16xf32, #tpu.memory_space<vmem>>, vector<8x16xf32>,
    return
  }
  func.func @transform_0(%arg0: i32) -> (i32, i32) {
    %c0_i32 = arith.constant 0 : i32
    %c0_i32_0 = arith.constant 0 : i32
    %c0_i32_1 = arith.constant 0 : i32
    return %c0_i32, %c0_i32_0 : i32, i32
  }
  func.func @transform_1(%arg0: i32) -> (i32, i32) {
    %c0_i32 = arith.constant 0 : i32
    %c0_i32_0 = arith.constant 0 : i32
    return %arg0, %c0_i32 : i32, i32
  }
  func.func @transform_2(%arg0: i32) -> (i32, i32) {
    %c0_i32 = arith.constant 0 : i32
    %c0_i32_0 = arith.constant 0 : i32
    %c0_i32_1 = arith.constant 0 : i32
    return %c0_i32, %c0_i32_0 : i32, i32
  }
  func.func @transform_3(%arg0: i32) -> (i32, i32) {
    %c0_i32 = arith.constant 0 : i32
    %c0_i32_0 = arith.constant 0 : i32
    return %arg0, %c0_i32 : i32, i32
  }
  func.func @transform_4(%arg0: i32) -> (i32, i32) {
    %c0_i32 = arith.constant 0 : i32
    %c0_i32_0 = arith.constant 0 : i32
    return %arg0, %c0_i32 : i32, i32
  }
}

</mosaic_0001>

<llo_original>
// kernel: tpu_custom_call.1
$region0: #{tpu_custom_call.1}
  #allocation0 [shape = 'u32[]', space=smem, size = 0x4, offset = 0x4, fixed_abs, tag = 'smem constant byte address 0x4 - core index']
  #allocation1 [shape = 'u32[72,128]{1,0:T(1,128)}', space=vmem, size = 0x9000, scoped, tag = 'internal scratch']
  %s0 = inlined_call_operand.vmem [shape: bf16[16,128], index: 0, kind: input, shape index: {}]
  %s1 = inlined_call_operand.vmem [shape: s32[16,1], index: 1, kind: input, shape index: {}]
  %s2 = inlined_call_operand.vmem [shape: s32[1,16], index: 2, kind: input, shape index: {}]
  %s3 = inlined_call_operand.hbm [shape: f32[8,16], index: 3, kind: output, shape index: {0}]
  %s4 = inlined_call_operand.hbm [shape: f32[8,16], index: 4, kind: output, shape index: {1}]
  %5 = xla_tuple %s3, %s4
  %s6 = sld [smem:[#allocation0]]
  $region30: #{tpu_custom_call.1} parent=0
    _
  %s8 = ssub.s32 1, %s6
  %s9 = scalar_select 0, %s8, %s6
  $region1: #{tpu_custom_call.1} parent=0
    #allocation2 [shape = 'u8[4096]{0}', space=vmem, size = 0x1000, scoped, tag = 'output window, operand 0, single buffered']
    #allocation3 [shape = 's32[1]{0}', space=sflag, size = 0x4, scoped, tag = 'scoped memory for tpu_custom_call.1']
    #allocation4 [shape = 'u8[4096]{0}', space=vmem, size = 0x1000, scoped, tag = 'output window, operand 1, single buffered']
    #allocation5 [shape = 's32[1]{0}', space=sflag, size = 0x4, scoped, tag = 'scoped memory for tpu_custom_call.1']
    %10 = vsyncpa [#allocation3], 0
    %11 = vsyncpa [#allocation5], 0
    // Predicated region
    $region2: #{tpu_custom_call.1} parent=1 // pred_check
      _
    $region3: #{tpu_custom_call.1} parent=1 // pred_check_branch
      %13 = sbr.rel (0) target = $region5
    $region4: #{tpu_custom_call.1} parent=1 // pred_region
      _
    $region5: #{tpu_custom_call.1} parent=1 // pred_fallthru
      _
    // Predicated region
    $region6: #{tpu_custom_call.1} parent=1 // pred_check
      _
    $region7: #{tpu_custom_call.1} parent=1 // pred_check_branch
      %15 = sbr.rel (0) target = $region9
    $region8: #{tpu_custom_call.1} parent=1 // pred_region
      _
    $region9: #{tpu_custom_call.1} parent=1 // pred_fallthru
      _
    // Predicated region
    $region10: #{tpu_custom_call.1} parent=1 // pred_check
      _
    $region11: #{tpu_custom_call.1} parent=1 // pred_check_branch
      %17 = sbr.rel (0) target = $region13
    $region12: #{tpu_custom_call.1} parent=1 // pred_region
      _
    $region13: #{tpu_custom_call.1} parent=1 // pred_fallthru
      _
    %s19 = smul.u32 0, 16
    %s20 = sshra.s32 %s19, 3
    %s21 = sand.u32 %s19, 7
    %s22 = smul.addr %s20, 4
    %s23 = scalar_lea.vmem %s0, %s22
    %v24 = vld [vmem:[%s23] sm:$0xf]
    %v25 = vld [vmem:[%s23 + $0x4] sm:$0xf]
    %v26 = vld [vmem:[%s0] sm:$0xf]
    %v27 = vld [vmem:[%s0 + $0x4] sm:$0xf]
    %v30 = vunpack.c.l.b16 %v24
    %v31 = vunpack.c.l.b16 %v25
    %v32 = vpack.c.b16 %v31, %v30
    %v36 = vunpack.c.l.b16 %v26
    %v37 = vunpack.c.l.b16 %v27
    %v38 = vpack.c.b16 %v37, %v36
    %40 = vmatpush.bf16.xpose.msra.mxu0 0
    %41 = vmatpush.bf16.xpose.msra.mxu0 0
    %42 = vmatpush.bf16.xpose.msra.mxu0 0
    %43 = vmatpush.bf16.xpose.msra.mxu0 0
    %44 = vmatpush.bf16.xpose.msra.mxu0 0
    %45 = vmatpush.bf16.xpose.msra.mxu0 0
    %46 = vmatpush.bf16.xpose.msra.mxu0 0
    %47 = vmatpush.bf16.xpose.msra.mxu0 %v38
    %48 = vmatmul.bf16.gmra.mxu0 %v32
    %v49 = vpop.f32.mrf.mxu0
    %v50 = vadd.f32 0.0, %v49
    %v51 = vpop.f32.mrf.mxu0
    %v52 = vadd.f32 0.0, %v51
    %53 = vdwg.mxu0
    %v54 = vld [vmem:[%s1] sm:$0xff]
    %v55 = vld [vmem:[%s1 + $0x8] sm:$0xff]
    %v56 = vld [vmem:[%s2] sm:$0x1]
    %57 = vset.pattern.permute.xlu0 0
    %58 = vperm.xlu0 %57, %v54
    %v59 = vpop.permute.xlu0 %58
    %60 = vset.pattern.permute.xlu0 0
    %61 = vperm.xlu0 %60, %v55
    %v62 = vpop.permute.xlu0 %61
    %v63 = vperm.slane %v56, 0
    %vm64 = vcmp.eq.s32.totalorder %v59, %v63
    %vm65 = vcmp.eq.s32.totalorder %v62, %v63
    %v66 = vlaneseq
    %v67 = vand.u32 %v66, 127
    %v68 = vlaneseq
    %v69 = vshrl.u32 %v68, 7
    %v70 = vadd.s32 %v69, 8
    %v71 = vstv %s19
    %v72 = vadd.s32 %v69, %v71
    %v73 = vadd.s32 %v70, %v71
    %vm74 = vcmp.ne.s32.totalorder %v67, %v72
    %vm75 = vcmp.ne.s32.totalorder %v67, %v73
    %vm76 = vmand %vm64, %vm74
    %vm77 = vmand %vm65, %vm75
    %v78 = vsel %vm76, %v50, 0.0
    %v79 = vsel %vm77, %v52, 0.0
    %vm80 = vcmask 130048
    %v81 = vsel %vm80, %v78, 0.0
    %82 = vadd.xlane.f32.xlu0 %v81
    %v83 = vpop.xlane.xlu0 %82
    %v84 = vsel %vm80, %v79, 0.0
    %85 = vadd.xlane.f32.xlu0 %v84
    %v86 = vpop.xlane.xlu0 %85
    %v87 = vsel %vm64, 0.0, %v50
    %v88 = vsel %vm65, 0.0, %v52
    %v89 = vsel %vm80, %v87, 0.0
    %90 = vadd.xlane.f32.xlu0 %v89
    %v91 = vpop.xlane.xlu0 %90
    %v92 = vsel %vm80, %v88, 0.0
    %93 = vadd.xlane.f32.xlu0 %v92
    %v94 = vpop.xlane.xlu0 %93
    %v95 = vmul.f32 %v83, 0.33333334
    %v96 = vmul.f32 %v86, 0.33333334
    %v97 = vmax.f32 %v95, 0.25
    %v98 = vmax.f32 %v96, 0.25
    %v99 = vmul.f32 %v91, 0.083333336
    %v100 = vmul.f32 %v94, 0.083333336
    %v101 = vmin.f32 %v99, 0.75
    %v102 = vmin.f32 %v100, 0.75
    %v103 = vsub.f32 0.75, %v50
    %v104 = vsub.f32 0.75, %v52
    %v105 = vmax.f32 %v103, 0.0
    %v106 = vmax.f32 %v104, 0.0
    %v107 = vsub.f32 %v50, 0.25
    %v108 = vsub.f32 %v52, 0.25
    %v109 = vmax.f32 %v107, 0.0
    %v110 = vmax.f32 %v108, 0.0
    %v111 = vsel %vm64, %v105, %v109
    %v112 = vsel %vm65, %v106, %v110
    %v113 = vsub.f32 %v97, %v50
    %v114 = vsub.f32 %v98, %v52
    %v115 = vsub.f32 %v50, %v101
    %v116 = vsub.f32 %v52, %v102
    %v117 = vsel %vm64, %v113, %v115
    %v118 = vsel %vm65, %v114, %v116
    %v119 = vmax.f32 %v117, 0.0
    %v120 = vmax.f32 %v118, 0.0
    %v121 = vmul.f32 %v119, 1.442695
    %v122 = vpow.pop %v121
    %v123 = vmul.f32 %v120, 1.442695
    %v124 = vpow.pop %v123
    %v125 = vmul.f32 %v122, %v111
    %v126 = vmul.f32 %v124, %v112
    %v127 = vmul.f32 %v125, %v125
    %v128 = vmul.f32 %v126, %v126
    %v129 = vsel %vm76, %v127, 0.0
    %v130 = vsel %vm77, %v128, 0.0
    %v131 = vsel %vm64, 0.0, %v127
    %v132 = vsel %vm65, 0.0, %v128
    %v133 = vsel %vm80, %v129, 0.0
    %v134 = vsel %vm80, %v130, 0.0
    %v135 = vadd.f32 %v133, %v134
    %136 = vst.msk [vmem:[#allocation2] sm:$0xff] %vm80, %v135
    %v137 = vsel %vm80, %v131, 0.0
    %v138 = vsel %vm80, %v132, 0.0
    %v139 = vadd.f32 %v137, %v138
    %140 = vst.msk [vmem:[#allocation4] sm:$0xff] %vm80, %v139
    // Predicated region
    $region14: #{tpu_custom_call.1} parent=1 // pred_check
      _
    $region15: #{tpu_custom_call.1} parent=1 // pred_check_branch
      %142 = sbr.rel (0) target = $region17
    $region16: #{tpu_custom_call.1} parent=1 // pred_region
      %144 = vsyncadd [#allocation3], 0
      %s146 = sshll.u32 [#allocation2], 4
      %s147 = int_to_ptr.vmem [resolvable:$true] %s146
      %s148 = sshll.u32 %s3, 4
      %s149 = int_to_ptr.hbm [resolvable:$true] %s148
      %151 = dma.vmem_to_hbm [thread:$0]  %s147, 128, %s149, [#allocation3]
    $region17: #{tpu_custom_call.1} parent=1 // pred_fallthru
      _
    // Predicated region
    $region18: #{tpu_custom_call.1} parent=1 // pred_check
      _
    $region19: #{tpu_custom_call.1} parent=1 // pred_check_branch
      %153 = sbr.rel (0) target = $region21
    $region20: #{tpu_custom_call.1} parent=1 // pred_region
      %155 = vsyncadd [#allocation5], 0
      %s157 = sshll.u32 [#allocation4], 4
      %s158 = int_to_ptr.vmem [resolvable:$true] %s157
      %s159 = sshll.u32 %s4, 4
      %s160 = int_to_ptr.hbm [resolvable:$true] %s159
      %162 = dma.vmem_to_hbm [thread:$0]  %s158, 128, %s160, [#allocation5]
    $region21: #{tpu_custom_call.1} parent=1 // pred_fallthru
      _
    // Predicated region
    $region22: #{tpu_custom_call.1} parent=1 // pred_check
      _
    $region23: #{tpu_custom_call.1} parent=1 // pred_check_branch
      %164 = sbr.rel (0) target = $region25
    $region24: #{tpu_custom_call.1} parent=1 // pred_region
      %166 = dma.done [#allocation3], 128
    $region25: #{tpu_custom_call.1} parent=1 // pred_fallthru
      _
    // Predicated region
    $region26: #{tpu_custom_call.1} parent=1 // pred_check
      _
    $region27: #{tpu_custom_call.1} parent=1 // pred_check_branch
      %168 = sbr.rel (0) target = $region29
    $region28: #{tpu_custom_call.1} parent=1 // pred_region
      %170 = dma.done [#allocation5], 128
    $region29: #{tpu_custom_call.1} parent=1 // pred_fallthru
      _
    %171 = vsyncpa [#allocation3], 1
    %172 = vsyncpa [#allocation5], 1

// kernel: tpu_custom_call.1
$region0: #{tpu_custom_call.1}
  #allocation0 [shape = 'u32[]', space=smem, size = 0x4, offset = 0x4, fixed_abs, tag = 'smem constant byte address 0x4 - core index']
  #allocation1 [shape = 'u32[72,128]{1,0:T(1,128)}', space=vmem, size = 0x9000, scoped, tag = 'internal scratch']
  %s0 = inlined_call_operand.vmem [shape: bf16[16,128], index: 0, kind: input, shape index: {}]
  %s1 = inlined_call_operand.vmem [shape: s32[16,1], index: 1, kind: input, shape index: {}]
  %s2 = inlined_call_operand.vmem [shape: s32[1,16], index: 2, kind: input, shape index: {}]
  %s3 = inlined_call_operand.hbm [shape: f32[8,16], index: 3, kind: output, shape index: {0}]
  %s4 = inlined_call_operand.hbm [shape: f32[8,16], index: 4, kind: output, shape index: {1}]
  %5 = xla_tuple %s3, %s4
  %s6 = sld [smem:[#allocation0]]
  $region30: #{tpu_custom_call.1} parent=0
    _
  %s8 = ssub.s32 1, %s6
  %s9 = scalar_select 0, %s8, %s6
  $region1: #{tpu_custom_call.1} parent=0
    #allocation2 [shape = 'u8[4096]{0}', space=vmem, size = 0x1000, scoped, tag = 'output window, operand 0, single buffered']
    #allocation3 [shape = 's32[1]{0}', space=sflag, size = 0x4, scoped, tag = 'scoped memory for tpu_custom_call.1']
    #allocation4 [shape = 'u8[4096]{0}', space=vmem, size = 0x1000, scoped, tag = 'output window, operand 1, single buffered']
    #allocation5 [shape = 's32[1]{0}', space=sflag, size = 0x4, scoped, tag = 'scoped memory for tpu_custom_call.1']
    %10 = vsyncpa [#allocation3], 0
    %11 = vsyncpa [#allocation5], 0
    // Predicated region
    $region2: #{tpu_custom_call.1} parent=1 // pred_check
      _
    $region3: #{tpu_custom_call.1} parent=1 // pred_check_branch
      %13 = sbr.rel (0) target = $region5
    $region4: #{tpu_custom_call.1} parent=1 // pred_region
      _
    $region5: #{tpu_custom_call.1} parent=1 // pred_fallthru
      _
    // Predicated region
    $region6: #{tpu_custom_call.1} parent=1 // pred_check
      _
    $region7: #{tpu_custom_call.1} parent=1 // pred_check_branch
      %15 = sbr.rel (0) target = $region9
    $region8: #{tpu_custom_call.1} parent=1 // pred_region
      _
    $region9: #{tpu_custom_call.1} parent=1 // pred_fallthru
      _
    // Predicated region
    $region10: #{tpu_custom_call.1} parent=1 // pred_check
      _
    $region11: #{tpu_custom_call.1} parent=1 // pred_check_branch
      %17 = sbr.rel (0) target = $region13
    $region12: #{tpu_custom_call.1} parent=1 // pred_region
      _
    $region13: #{tpu_custom_call.1} parent=1 // pred_fallthru
      _
    %s19 = smul.u32 0, 16
    %s20 = sshra.s32 %s19, 3
    %s21 = sand.u32 %s19, 7
    %s22 = smul.addr %s20, 4
    %s23 = scalar_lea.vmem %s0, %s22
    %v24 = vld [vmem:[%s23] sm:$0xf]
    %v25 = vld [vmem:[%s23 + $0x4] sm:$0xf]
    %v26 = vld [vmem:[%s0] sm:$0xf]
    %v27 = vld [vmem:[%s0 + $0x4] sm:$0xf]
    %v30 = vunpack.c.l.b16 %v24
    %v31 = vunpack.c.l.b16 %v25
    %v32 = vpack.c.b16 %v31, %v30
    %v36 = vunpack.c.l.b16 %v26
    %v37 = vunpack.c.l.b16 %v27
    %v38 = vpack.c.b16 %v37, %v36
    %40 = vmatpush.bf16.xpose.msra.mxu0 0
    %41 = vmatpush.bf16.xpose.msra.mxu0 0
    %42 = vmatpush.bf16.xpose.msra.mxu0 0
    %43 = vmatpush.bf16.xpose.msra.mxu0 0
    %44 = vmatpush.bf16.xpose.msra.mxu0 0
    %45 = vmatpush.bf16.xpose.msra.mxu0 0
    %46 = vmatpush.bf16.xpose.msra.mxu0 0
    %47 = vmatpush.bf16.xpose.msra.mxu0 %v38
    %48 = vmatmul.bf16.gmra.mxu0 %v32
    %v49 = vpop.f32.mrf.mxu0
    %v50 = vadd.f32 0.0, %v49
    %v51 = vpop.f32.mrf.mxu0
    %v52 = vadd.f32 0.0, %v51
    %53 = vdwg.mxu0
    %v54 = vld [vmem:[%s1] sm:$0xff]
    %v55 = vld [vmem:[%s1 + $0x8] sm:$0xff]
    %v56 = vld [vmem:[%s2] sm:$0x1]
    %57 = vset.pattern.permute.xlu0 0
    %58 = vperm.xlu0 %57, %v54
    %v59 = vpop.permute.xlu0 %58
    %60 = vset.pattern.permute.xlu0 0
    %61 = vperm.xlu0 %60, %v55
    %v62 = vpop.permute.xlu0 %61
    %v63 = vperm.slane %v56, 0
    %vm64 = vcmp.eq.s32.totalorder %v59, %v63
    %vm65 = vcmp.eq.s32.totalorder %v62, %v63
    %v66 = vlaneseq
    %v67 = vand.u32 %v66, 127
    %v68 = vlaneseq
    %v69 = vshrl.u32 %v68, 7
    %v70 = vadd.s32 %v69, 8
    %v71 = vstv %s19
    %v72 = vadd.s32 %v69, %v71
    %v73 = vadd.s32 %v70, %v71
    %vm74 = vcmp.ne.s32.totalorder %v67, %v72
    %vm75 = vcmp.ne.s32.totalorder %v67, %v73
    %vm76 = vmand %vm64, %vm74
    %vm77 = vmand %vm65, %vm75
    %v78 = vsel %vm76, %v50, 0.0
    %v79 = vsel %vm77, %v52, 0.0
    %vm80 = vcmask 130048
    %v81 = vsel %vm80, %v78, 0.0
    %82 = vadd.xlane.f32.xlu0 %v81
    %v83 = vpop.xlane.xlu0 %82
    %v84 = vsel %vm80, %v79, 0.0
    %85 = vadd.xlane.f32.xlu0 %v84
    %v86 = vpop.xlane.xlu0 %85
    %v87 = vsel %vm64, 0.0, %v50
    %v88 = vsel %vm65, 0.0, %v52
    %v89 = vsel %vm80, %v87, 0.0
    %90 = vadd.xlane.f32.xlu0 %v89
    %v91 = vpop.xlane.xlu0 %90
    %v92 = vsel %vm80, %v88, 0.0
    %93 = vadd.xlane.f32.xlu0 %v92
    %v94 = vpop.xlane.xlu0 %93
    %v95 = vmul.f32 %v83, 0.33333334
    %v96 = vmul.f32 %v86, 0.33333334
    %v97 = vmax.f32 %v95, 0.25
    %v98 = vmax.f32 %v96, 0.25
    %v99 = vmul.f32 %v91, 0.083333336
    %v100 = vmul.f32 %v94, 0.083333336
    %v101 = vmin.f32 %v99, 0.75
    %v102 = vmin.f32 %v100, 0.75
    %v103 = vsub.f32 0.75, %v50
    %v104 = vsub.f32 0.75, %v52
    %v105 = vmax.f32 %v103, 0.0
    %v106 = vmax.f32 %v104, 0.0
    %v107 = vsub.f32 %v50, 0.25
    %v108 = vsub.f32 %v52, 0.25
    %v109 = vmax.f32 %v107, 0.0
    %v110 = vmax.f32 %v108, 0.0
    %v111 = vsel %vm64, %v105, %v109
    %v112 = vsel %vm65, %v106, %v110
    %v113 = vsub.f32 %v97, %v50
    %v114 = vsub.f32 %v98, %v52
    %v115 = vsub.f32 %v50, %v101
    %v116 = vsub.f32 %v52, %v102
    %v117 = vsel %vm64, %v113, %v115
    %v118 = vsel %vm65, %v114, %v116
    %v119 = vmax.f32 %v117, 0.0
    %v120 = vmax.f32 %v118, 0.0
    %v121 = vmul.f32 %v119, 1.442695
    %v122 = vpow.pop %v121
    %v123 = vmul.f32 %v120, 1.442695
    %v124 = vpow.pop %v123
    %v125 = vmul.f32 %v122, %v111
    %v126 = vmul.f32 %v124, %v112
    %v127 = vmul.f32 %v125, %v125
    %v128 = vmul.f32 %v126, %v126
    %v129 = vsel %vm76, %v127, 0.0
    %v130 = vsel %vm77, %v128, 0.0
    %v131 = vsel %vm64, 0.0, %v127
    %v132 = vsel %vm65, 0.0, %v128
    %v133 = vsel %vm80, %v129, 0.0
    %v134 = vsel %vm80, %v130, 0.0
    %v135 = vadd.f32 %v133, %v134
    %136 = vst.msk [vmem:[#allocation2] sm:$0xff] %vm80, %v135
    %v137 = vsel %vm80, %v131, 0.0
    %v138 = vsel %vm80, %v132, 0.0
    %v139 = vadd.f32 %v137, %v138
    %140 = vst.msk [vmem:[#allocation4] sm:$0xff] %vm80, %v139
    // Predicated region
    $region14: #{tpu_custom_call.1} parent=1 // pred_check
      _
    $region15: #{tpu_custom_call.1} parent=1 // pred_check_branch
      %142 = sbr.rel (0) target = $region17
    $region16: #{tpu_custom_call.1} parent=1 // pred_region
      %144 = vsyncadd [#allocation3], 0
      %s146 = sshll.u32 [#allocation2], 4
      %s147 = int_to_ptr.vmem [resolvable:$true] %s146
      %s148 = sshll.u32 %s3, 4
      %s149 = int_to_ptr.hbm [resolvable:$true] %s148
      %151 = dma.vmem_to_hbm [thread:$0]  %s147, 128, %s149, [#allocation3]
    $region17: #{tpu_custom_call.1} parent=1 // pred_fallthru
      _
    // Predicated region
    $region18: #{tpu_custom_call.1} parent=1 // pred_check
      _
    $region19: #{tpu_custom_call.1} parent=1 // pred_check_branch
      %153 = sbr.rel (0) target = $region21
    $region20: #{tpu_custom_call.1} parent=1 // pred_region
      %155 = vsyncadd [#allocation5], 0
      %s157 = sshll.u32 [#allocation4], 4
      %s158 = int_to_ptr.vmem [resolvable:$true] %s157
      %s159 = sshll.u32 %s4, 4
      %s160 = int_to_ptr.hbm [resolvable:$true] %s159
      %162 = dma.vmem_to_hbm [thread:$0]  %s158, 128, %s160, [#allocation5]
    $region21: #{tpu_custom_call.1} parent=1 // pred_fallthru
      _
    // Predicated region
    $region22: #{tpu_custom_call.1} parent=1 // pred_check
      _
    $region23: #{tpu_custom_call.1} parent=1 // pred_check_branch
      %164 = sbr.rel (0) target = $region25
    $region24: #{tpu_custom_call.1} parent=1 // pred_region
      %166 = dma.done [#allocation3], 128
    $region25: #{tpu_custom_call.1} parent=1 // pred_fallthru
      _
    // Predicated region
    $region26: #{tpu_custom_call.1} parent=1 // pred_check
      _
    $region27: #{tpu_custom_call.1} parent=1 // pred_check_branch
      %168 = sbr.rel (0) target = $region29
    $region28: #{tpu_custom_call.1} parent=1 // pred_region
      %170 = dma.done [#allocation5], 128
    $region29: #{tpu_custom_call.1} parent=1 // pred_fallthru
      _
    %171 = vsyncpa [#allocation3], 1
    %172 = vsyncpa [#allocation5], 1

</llo_original>
